<compile_context>
chip_gen: v7x
topology: tpu7x:2x2x1
jax: 0.10.0
libtpu: 0.0.40
codegen_flags: <defaults>
</compile_context>

<pallas_src>
import functools

import numpy as np
import jax
import jax.numpy as jnp
from jax import lax
from jax.experimental import pallas as pl
from jax.experimental.pallas import tpu as pltpu

LN_EPS = 1e-5


def _round_up(v, m):
    return (v + m - 1) // m * m


def _pick_batch_block(n, max_b=8):
    """Largest divisor of n that is <= max_b (samples per grid step)."""
    for b in range(min(n, max_b), 0, -1):
        if n % b == 0:
            return b
    return 1


def _tap_masks(H, W, c_rows):
    """(9, c_rows, H*W) f32 validity masks for the 9 taps of a 3x3 conv (pad=1).

    Pre-broadcast over `c_rows` sublanes so the in-kernel multiply is a plain
    vreg-aligned VPU multiply (no per-tap sublane broadcast)."""
    yy, xx = np.mgrid[0:H, 0:W]
    ms = []
    for kh in range(3):
        for kw in range(3):
            dy, dx = kh - 1, kw - 1
            m = (yy + dy >= 0) & (yy + dy < H) & (xx + dx >= 0) & (xx + dx < W)
            ms.append(np.broadcast_to(m.reshape(1, H * W), (c_rows, H * W)))
    return jnp.asarray(np.stack(ms), dtype=jnp.float32)


# -----------------------------------------------------------------------------
# Fused per-block kernel: LayerNorm -> conv3x3+SiLU -> conv3x3+SiLU for B samples
# -----------------------------------------------------------------------------
def _fused_kernel(x_ref, g_ref, b_ref, m_ref, w1_ref, b1_ref, w2_ref, b2_ref,
                  o_ref, *, B, H, W, n_valid, pad_elems, normalize):
    HW = H * W
    L = B * HW

    # ---- LayerNorm (two-pass, per sample), then lane-concat the B samples ----
    if normalize:
        g = g_ref[...]                                   # (Cp_in, HW) f32
        bt = b_ref[...]
    cols = []
    for b in range(B):
        xb = x_ref[b].astype(jnp.float32)                # (Cp_in, HW)
        if normalize:
            mean = jnp.sum(xb) / n_valid
            xc = xb - mean                               # padded rows become -mean
            # padded (zero) channels add pad_elems*mean^2 to sum(xc^2): remove it
            var = (jnp.sum(xc * xc) - pad_elems * mean * mean) / n_valid
            inv = lax.rsqrt(var + LN_EPS)
            xb = xc * (g * inv) + bt                     # padded rows -> 0 (gamma/beta padded w/ 0)
        cols.append(xb)
    x = cols[0] if B == 1 else jnp.concatenate(cols, axis=1)   # (Cp_in, L) f32

    # ---- 3x3 conv (pad=1) as a single (Cout, 9*Cin) @ (9*Cin, L) contraction ----
    def conv3x3_silu(h, w_ref, bias_ref):
        C = h.shape[0]
        taps = []
        for t in range(9):
            kh, kw = divmod(t, 3)
            sft = (kh - 1) * W + (kw - 1)
            if sft == 0:                                 # center tap: all-valid mask, no roll
                taps.append(h.astype(jnp.bfloat16))
                continue
            amt = (-sft) % L
            r = pltpu.roll(h, shift=amt, axis=1)         # XLU lane rotate
            m = m_ref[t] if C == m_ref.shape[1] else m_ref[t, 0:C, :]   # (C, L) f32
            taps.append((r * m).astype(jnp.bfloat16))    # early per-tap bf16 cast
        slab = jnp.concatenate(taps, axis=0)             # (9*C, L) bf16
        y = jnp.dot(w_ref[...], slab,                    # weights pre-cast to bf16
                    preferred_element_type=jnp.float32)  # (Cout, L) f32 acc
        y = y + bias_ref[...]                            # (Cout, 1) lane-broadcast
        s = pl.reciprocal(1.0 + jnp.exp(-y), approx=True)   # sigmoid on the EUP slot
        return y * s                                     # SiLU in f32

    h1 = conv3x3_silu(x, w1_ref, b1_ref)
    h2 = conv3x3_silu(h1, w2_ref, b2_ref)

    for b in range(B):
        o_ref[b] = h2[:, b * HW:(b + 1) * HW].astype(o_ref.dtype)


# -----------------------------------------------------------------------------
# One-time parameter re-layout (outside the jitted forward)
# -----------------------------------------------------------------------------
def prepare_params(params, H, W):
    gamma, beta, w1, b1, w2, b2 = params                 # conv weights are OIHW
    C_out, C_in = w1.shape[0], w1.shape[1]
    Cp_in, Cp_out = _round_up(C_in, 8), _round_up(C_out, 8)
    Cmax = max(Cp_in, Cp_out)
    HW = H * W

    def conv_w_2d(w, cop, cip):
        o, i = w.shape[0], w.shape[1]
        w = jnp.pad(w, ((0, cop - o), (0, cip - i), (0, 0), (0, 0)))
        # (Op, Ip, 3, 3) -> (Op, 3, 3, Ip) -> (Op, 9*Ip); column = (kh*3+kw)*Ip + ci
        return jnp.transpose(w, (0, 2, 3, 1)).reshape(cop, 9 * cip).astype(jnp.bfloat16)

    g2 = jnp.pad(gamma.reshape(C_in, HW), ((0, Cp_in - C_in), (0, 0))).astype(jnp.float32)
    bt2 = jnp.pad(beta.reshape(C_in, HW), ((0, Cp_in - C_in), (0, 0))).astype(jnp.float32)
    masks = _tap_masks(H, W, Cmax)                       # (9, Cmax, HW) f32, sublane-full
    w1_2d = conv_w_2d(w1, Cp_out, Cp_in)                 # bf16, done once on host
    w2_2d = conv_w_2d(w2, Cp_out, Cp_out)
    b1_2d = jnp.pad(b1, (0, Cp_out - C_out)).reshape(Cp_out, 1).astype(jnp.float32)
    b2_2d = jnp.pad(b2, (0, Cp_out - C_out)).reshape(Cp_out, 1).astype(jnp.float32)
    return (g2, bt2, masks, w1_2d, b1_2d, w2_2d, b2_2d)


# -----------------------------------------------------------------------------
# Forward (single pallas_call) + pure-JAX reference
# -----------------------------------------------------------------------------
@functools.partial(jax.jit, static_argnames=("c_out", "normalize"))
def myblock_forward(x_nchw, prepped, c_out, normalize=True):
    g2, bt2, masks, w1_2d, b1_2d, w2_2d, b2_2d = prepped
    N, C_in, H, W = x_nchw.shape
    HW = H * W
    Cp_in, Cp_out = g2.shape[0], w1_2d.shape[0]
    Cmax = masks.shape[1]

    B = _pick_batch_block(N)                             # samples per grid step
    L = B * HW

    # NCHW kept throughout: only a free reshape + a tiny zero channel pad.
    x = x_nchw.reshape(N, C_in, HW)
    if Cp_in != C_in:
        x = jnp.pad(x, ((0, 0), (0, Cp_in - C_in), (0, 0)))

    # Lane-tile masks for B samples per step (tiny, done once per call by XLA).
    masks_l = masks if B == 1 else jnp.tile(masks, (1, 1, B))

    kernel = functools.partial(
        _fused_kernel, B=B, H=H, W=W,
        n_valid=float(C_in * HW),
        pad_elems=float((Cp_in - C_in) * HW),
        normalize=normalize)

    out = pl.pallas_call(
        kernel,
        out_shape=jax.ShapeDtypeStruct((N, Cp_out, HW), x_nchw.dtype),
        grid_spec=pltpu.PrefetchScalarGridSpec(
            num_scalar_prefetch=0,
            grid=(N // B,),
            in_specs=[
                pl.BlockSpec((B, Cp_in, HW), lambda n: (n, 0, 0)),      # x
                pl.BlockSpec((Cp_in, HW), lambda n: (0, 0)),            # gamma
                pl.BlockSpec((Cp_in, HW), lambda n: (0, 0)),            # beta
                pl.BlockSpec((9, Cmax, L), lambda n: (0, 0, 0)),        # tap masks
                pl.BlockSpec((Cp_out, 9 * Cp_in), lambda n: (0, 0)),    # w1 (O, 9*I) bf16
                pl.BlockSpec((Cp_out, 1), lambda n: (0, 0)),            # b1
                pl.BlockSpec((Cp_out, 9 * Cp_out), lambda n: (0, 0)),   # w2 bf16
                pl.BlockSpec((Cp_out, 1), lambda n: (0, 0)),            # b2
            ],
            out_specs=pl.BlockSpec((B, Cp_out, HW), lambda n: (n, 0, 0)),
        ),
        compiler_params=pltpu.CompilerParams(
            dimension_semantics=("parallel",)),
    )(x, g2, bt2, masks_l, w1_2d, b1_2d, w2_2d, b2_2d)

    # Avoid a post-kernel copy when no channel padding was needed.
    if Cp_out != c_out:
        out = out[:, :c_out, :]
    return out.reshape(N, c_out, H, W)


def myblock_reference(x_nchw, params, normalize=True):
    gamma, beta, w1, b1, w2, b2 = params
    x = x_nchw
    if normalize:
        mean = jnp.mean(x, axis=(1, 2, 3), keepdims=True)
        var = jnp.mean((x - mean) ** 2, axis=(1, 2, 3), keepdims=True)
        x = (x - mean) / jnp.sqrt(var + LN_EPS) * gamma[None] + beta[None]

    def conv_silu(x, w, b):
        y = lax.conv_general_dilated(
            x, w, window_strides=(1, 1), padding=((1, 1), (1, 1)),
            dimension_numbers=("NCHW", "OIHW", "NCHW"),
            preferred_element_type=jnp.float32)
        y = y + b[None, :, None, None]
        return y * jax.nn.sigmoid(y)

    x = conv_silu(x, w1, b1)
    x = conv_silu(x, w2, b2)
    return x


if __name__ == "__main__":
    # Shapes consistent with MyBlock(shape=(C,H,W), in_c=C, out_c=...)
    N, C_in, H, W = 2, 4, 16, 16
    C_out = 8

    key = jax.random.PRNGKey(0)
    k_x, k_g, k_b, k_w1, k_b1, k_w2, k_b2 = jax.random.split(key, 7)

    x = jax.random.normal(k_x, (N, C_in, H, W), jnp.float32)

    # Parameters in PyTorch layouts: LayerNorm affine (C,H,W), Conv2d weights OIHW.
    gamma = 1.0 + 0.1 * jax.random.normal(k_g, (C_in, H, W), jnp.float32)
    beta = 0.1 * jax.random.normal(k_b, (C_in, H, W), jnp.float32)
    w1 = jax.random.normal(k_w1, (C_out, C_in, 3, 3), jnp.float32) / jnp.sqrt(C_in * 9.0)
    b1 = 0.1 * jax.random.normal(k_b1, (C_out,), jnp.float32)
    w2 = jax.random.normal(k_w2, (C_out, C_out, 3, 3), jnp.float32) / jnp.sqrt(C_out * 9.0)
    b2 = 0.1 * jax.random.normal(k_b2, (C_out,), jnp.float32)

    params = (gamma, beta, w1, b1, w2, b2)
    prepped = prepare_params(params, H, W)

    out = myblock_forward(x, prepped, c_out=C_out, normalize=True)
    out = jax.block_until_ready(out)

    ref = myblock_reference(x, params, normalize=True)
    assert out.shape == (N, C_out, H, W), out.shape
    max_err = float(jnp.max(jnp.abs(out - ref)))
    assert jnp.allclose(out, ref, atol=3e-2, rtol=3e-2), max_err

    print("KERNEL_OK")
</pallas_src>

<mosaic_0001>
module attributes {stable_mosaic.version = 11 : i64} {
  func.func @_fused_kernel(%arg0: i32, %arg1: memref<2x8x256xf32, #tpu.memory_space<vmem>>, %arg2: memref<8x256xf32, #tpu.memory_space<vmem>>, %arg3: memref<8x256xf32, #tpu.memory_space<vmem>>, %arg4: memref<9x8x512xf32, #tpu.memory_space<vmem>>, %arg5: memref<8x72xbf16, #tpu.memory_space<vmem>>, %arg6: memref<8x1xf32, #tpu.memory_space<vmem>>, %arg7: memref<8x72xbf16, #tpu.memory_space<vmem>>, %arg8: memref<8x1xf32, #tpu.memory_space<vmem>>, %arg9: memref<2x8x256xf32, #tpu.memory_space<vmem>>) attributes {dimension_semantics = [#tpu.dimension_semantics<parallel>], iteration_bounds = array<i64: 1>, scalar_prefetch = 0 : i64, scratch_operands = 0 : i64, tpu.core_type = #tpu.core_type<tc>, window_params = [{transform_indices = @transform_0, window_bounds = array<i64: 2, 8, 256>}, {pipeline_mode = #tpu.pipeline_mode<synchronous>, transform_indices = @transform_1, window_bounds = array<i64: 8, 256>}, {pipeline_mode = #tpu.pipeline_mode<synchronous>, transform_indices = @transform_2, window_bounds = array<i64: 8, 256>}, {pipeline_mode = #tpu.pipeline_mode<synchronous>, transform_indices = @transform_3, window_bounds = array<i64: 9, 8, 512>}, {pipeline_mode = #tpu.pipeline_mode<synchronous>, transform_indices = @transform_4, window_bounds = array<i64: 8, 72>}, {pipeline_mode = #tpu.pipeline_mode<synchronous>, transform_indices = @transform_5, window_bounds = array<i64: 8, 1>}, {pipeline_mode = #tpu.pipeline_mode<synchronous>, transform_indices = @transform_6, window_bounds = array<i64: 8, 72>}, {pipeline_mode = #tpu.pipeline_mode<synchronous>, transform_indices = @transform_7, window_bounds = array<i64: 8, 1>}, {transform_indices = @transform_8, window_bounds = array<i64: 2, 8, 256>}]} {
    %c0 = arith.constant 0 : index
    %c0_0 = arith.constant 0 : index
    %0 = vector.load %arg2[%c0, %c0_0] : memref<8x256xf32, #tpu.memory_space<vmem>>, vector<8x256xf32>
    %c0_1 = arith.constant 0 : index
    %c0_2 = arith.constant 0 : index
    %1 = vector.load %arg3[%c0_1, %c0_2] : memref<8x256xf32, #tpu.memory_space<vmem>>, vector<8x256xf32>
    %c0_3 = arith.constant 0 : index
    %c0_4 = arith.constant 0 : index
    %c0_5 = arith.constant 0 : index
    %2 = vector.load %arg1[%c0_3, %c0_4, %c0_5] : memref<2x8x256xf32, #tpu.memory_space<vmem>>, vector<1x8x256xf32>
    %3 = vector.shape_cast %2 : vector<1x8x256xf32> to vector<8x256xf32>
    %4 = vector.shape_cast %3 : vector<8x256xf32> to vector<1x8x256xf32>
    %cst = arith.constant dense<0.000000e+00> : vector<1xf32>
    %5 = vector.multi_reduction <add>, %4, %cst [1, 2] : vector<1x8x256xf32> to vector<1xf32>
    %6 = vector.shape_cast %5 : vector<1xf32> to vector<1x1x1xf32>
    %7 = vector.extract %6[0, 0, 0] : f32 from vector<1x1x1xf32>
    %cst_6 = arith.constant 1.024000e+03 : f32
    %8 = arith.divf %7, %cst_6 : f32
    %9 = vector.broadcast %8 : f32 to vector<8x256xf32>
    %10 = arith.subf %3, %9 : vector<8x256xf32>
    %11 = arith.mulf %10, %10 : vector<8x256xf32>
    %12 = vector.shape_cast %11 : vector<8x256xf32> to vector<1x8x256xf32>
    %cst_7 = arith.constant dense<0.000000e+00> : vector<1xf32>
    %13 = vector.multi_reduction <add>, %12, %cst_7 [1, 2] : vector<1x8x256xf32> to vector<1xf32>
    %14 = vector.shape_cast %13 : vector<1xf32> to vector<1x1x1xf32>
    %15 = vector.extract %14[0, 0, 0] : f32 from vector<1x1x1xf32>
    %cst_8 = arith.constant 1.024000e+03 : f32
    %16 = arith.mulf %cst_8, %8 : f32
    %17 = arith.mulf %16, %8 : f32
    %18 = arith.subf %15, %17 : f32
    %cst_9 = arith.constant 1.024000e+03 : f32
    %19 = arith.divf %18, %cst_9 : f32
    %cst_10 = arith.constant 9.99999974E-6 : f32
    %20 = arith.addf %19, %cst_10 : f32
    %21 = math.rsqrt %20 : f32
    %22 = vector.broadcast %21 : f32 to vector<8x256xf32>
    %23 = arith.mulf %0, %22 : vector<8x256xf32>
    %24 = arith.mulf %10, %23 : vector<8x256xf32>
    %25 = arith.addf %24, %1 : vector<8x256xf32>
    %c1 = arith.constant 1 : index
    %c0_11 = arith.constant 0 : index
    %c0_12 = arith.constant 0 : index
    %26 = vector.load %arg1[%c1, %c0_11, %c0_12] : memref<2x8x256xf32, #tpu.memory_space<vmem>>, vector<1x8x256xf32>
    %27 = vector.shape_cast %26 : vector<1x8x256xf32> to vector<8x256xf32>
    %28 = vector.shape_cast %27 : vector<8x256xf32> to vector<1x8x256xf32>
    %cst_13 = arith.constant dense<0.000000e+00> : vector<1xf32>
    %29 = vector.multi_reduction <add>, %28, %cst_13 [1, 2] : vector<1x8x256xf32> to vector<1xf32>
    %30 = vector.shape_cast %29 : vector<1xf32> to vector<1x1x1xf32>
    %31 = vector.extract %30[0, 0, 0] : f32 from vector<1x1x1xf32>
    %cst_14 = arith.constant 1.024000e+03 : f32
    %32 = arith.divf %31, %cst_14 : f32
    %33 = vector.broadcast %32 : f32 to vector<8x256xf32>
    %34 = arith.subf %27, %33 : vector<8x256xf32>
    %35 = arith.mulf %34, %34 : vector<8x256xf32>
    %36 = vector.shape_cast %35 : vector<8x256xf32> to vector<1x8x256xf32>
    %cst_15 = arith.constant dense<0.000000e+00> : vector<1xf32>
    %37 = vector.multi_reduction <add>, %36, %cst_15 [1, 2] : vector<1x8x256xf32> to vector<1xf32>
    %38 = vector.shape_cast %37 : vector<1xf32> to vector<1x1x1xf32>
    %39 = vector.extract %38[0, 0, 0] : f32 from vector<1x1x1xf32>
    %cst_16 = arith.constant 1.024000e+03 : f32
    %40 = arith.mulf %cst_16, %32 : f32
    %41 = arith.mulf %40, %32 : f32
    %42 = arith.subf %39, %41 : f32
    %cst_17 = arith.constant 1.024000e+03 : f32
    %43 = arith.divf %42, %cst_17 : f32
    %cst_18 = arith.constant 9.99999974E-6 : f32
    %44 = arith.addf %43, %cst_18 : f32
    %45 = math.rsqrt %44 : f32
    %46 = vector.broadcast %45 : f32 to vector<8x256xf32>
    %47 = arith.mulf %0, %46 : vector<8x256xf32>
    %48 = arith.mulf %34, %47 : vector<8x256xf32>
    %49 = arith.addf %48, %1 : vector<8x256xf32>
    %50 = tpu.concatenate %25, %49 in 1 : vector<8x256xf32>, vector<8x256xf32> -> vector<8x512xf32>
    %c17_i32 = arith.constant 17 : i32
    %51 = tpu.dynamic_rotate %50 by %c17_i32 dim 1 : vector<8x512xf32>, i32 -> vector<8x512xf32>
    %c0_19 = arith.constant 0 : index
    %c0_20 = arith.constant 0 : index
    %c0_21 = arith.constant 0 : index
    %52 = vector.load %arg4[%c0_19, %c0_20, %c0_21] : memref<9x8x512xf32, #tpu.memory_space<vmem>>, vector<1x8x512xf32>
    %53 = vector.shape_cast %52 : vector<1x8x512xf32> to vector<8x512xf32>
    %54 = arith.mulf %51, %53 : vector<8x512xf32>
    %55 = arith.truncf %54 : vector<8x512xf32> to vector<8x512xbf16>
    %c16_i32 = arith.constant 16 : i32
    %56 = tpu.dynamic_rotate %50 by %c16_i32 dim 1 : vector<8x512xf32>, i32 -> vector<8x512xf32>
    %c1_22 = arith.constant 1 : index
    %c0_23 = arith.constant 0 : index
    %c0_24 = arith.constant 0 : index
    %57 = vector.load %arg4[%c1_22, %c0_23, %c0_24] : memref<9x8x512xf32, #tpu.memory_space<vmem>>, vector<1x8x512xf32>
    %58 = vector.shape_cast %57 : vector<1x8x512xf32> to vector<8x512xf32>
    %59 = arith.mulf %56, %58 : vector<8x512xf32>
    %60 = arith.truncf %59 : vector<8x512xf32> to vector<8x512xbf16>
    %c15_i32 = arith.constant 15 : i32
    %61 = tpu.dynamic_rotate %50 by %c15_i32 dim 1 : vector<8x512xf32>, i32 -> vector<8x512xf32>
    %c2 = arith.constant 2 : index
    %c0_25 = arith.constant 0 : index
    %c0_26 = arith.constant 0 : index
    %62 = vector.load %arg4[%c2, %c0_25, %c0_26] : memref<9x8x512xf32, #tpu.memory_space<vmem>>, vector<1x8x512xf32>
    %63 = vector.shape_cast %62 : vector<1x8x512xf32> to vector<8x512xf32>
    %64 = arith.mulf %61, %63 : vector<8x512xf32>
    %65 = arith.truncf %64 : vector<8x512xf32> to vector<8x512xbf16>
    %c1_i32 = arith.constant 1 : i32
    %66 = tpu.dynamic_rotate %50 by %c1_i32 dim 1 : vector<8x512xf32>, i32 -> vector<8x512xf32>
    %c3 = arith.constant 3 : index
    %c0_27 = arith.constant 0 : index
    %c0_28 = arith.constant 0 : index
    %67 = vector.load %arg4[%c3, %c0_27, %c0_28] : memref<9x8x512xf32, #tpu.memory_space<vmem>>, vector<1x8x512xf32>
    %68 = vector.shape_cast %67 : vector<1x8x512xf32> to vector<8x512xf32>
    %69 = arith.mulf %66, %68 : vector<8x512xf32>
    %70 = arith.truncf %69 : vector<8x512xf32> to vector<8x512xbf16>
    %71 = arith.truncf %50 : vector<8x512xf32> to vector<8x512xbf16>
    %c511_i32 = arith.constant 511 : i32
    %72 = tpu.dynamic_rotate %50 by %c511_i32 dim 1 : vector<8x512xf32>, i32 -> vector<8x512xf32>
    %c5 = arith.constant 5 : index
    %c0_29 = arith.constant 0 : index
    %c0_30 = arith.constant 0 : index
    %73 = vector.load %arg4[%c5, %c0_29, %c0_30] : memref<9x8x512xf32, #tpu.memory_space<vmem>>, vector<1x8x512xf32>
    %74 = vector.shape_cast %73 : vector<1x8x512xf32> to vector<8x512xf32>
    %75 = arith.mulf %72, %74 : vector<8x512xf32>
    %76 = arith.truncf %75 : vector<8x512xf32> to vector<8x512xbf16>
    %c497_i32 = arith.constant 497 : i32
    %77 = tpu.dynamic_rotate %50 by %c497_i32 dim 1 : vector<8x512xf32>, i32 -> vector<8x512xf32>
    %c6 = arith.constant 6 : index
    %c0_31 = arith.constant 0 : index
    %c0_32 = arith.constant 0 : index
    %78 = vector.load %arg4[%c6, %c0_31, %c0_32] : memref<9x8x512xf32, #tpu.memory_space<vmem>>, vector<1x8x512xf32>
    %79 = vector.shape_cast %78 : vector<1x8x512xf32> to vector<8x512xf32>
    %80 = arith.mulf %77, %79 : vector<8x512xf32>
    %81 = arith.truncf %80 : vector<8x512xf32> to vector<8x512xbf16>
    %c496_i32 = arith.constant 496 : i32
    %82 = tpu.dynamic_rotate %50 by %c496_i32 dim 1 : vector<8x512xf32>, i32 -> vector<8x512xf32>
    %c7 = arith.constant 7 : index
    %c0_33 = arith.constant 0 : index
    %c0_34 = arith.constant 0 : index
    %83 = vector.load %arg4[%c7, %c0_33, %c0_34] : memref<9x8x512xf32, #tpu.memory_space<vmem>>, vector<1x8x512xf32>
    %84 = vector.shape_cast %83 : vector<1x8x512xf32> to vector<8x512xf32>
    %85 = arith.mulf %82, %84 : vector<8x512xf32>
    %86 = arith.truncf %85 : vector<8x512xf32> to vector<8x512xbf16>
    %c495_i32 = arith.constant 495 : i32
    %87 = tpu.dynamic_rotate %50 by %c495_i32 dim 1 : vector<8x512xf32>, i32 -> vector<8x512xf32>
    %c8 = arith.constant 8 : index
    %c0_35 = arith.constant 0 : index
    %c0_36 = arith.constant 0 : index
    %88 = vector.load %arg4[%c8, %c0_35, %c0_36] : memref<9x8x512xf32, #tpu.memory_space<vmem>>, vector<1x8x512xf32>
    %89 = vector.shape_cast %88 : vector<1x8x512xf32> to vector<8x512xf32>
    %90 = arith.mulf %87, %89 : vector<8x512xf32>
    %91 = arith.truncf %90 : vector<8x512xf32> to vector<8x512xbf16>
    %92 = tpu.concatenate %55, %60, %65, %70, %71, %76, %81, %86, %91 in 0 : vector<8x512xbf16>, vector<8x512xbf16>, vector<8x512xbf16>, vector<8x512xbf16>, vector<8x512xbf16>, vector<8x512xbf16>, vector<8x512xbf16>, vector<8x512xbf16>, vector<8x512xbf16> -> vector<72x512xbf16>
    %c0_37 = arith.constant 0 : index
    %c0_38 = arith.constant 0 : index
    %93 = vector.load %arg5[%c0_37, %c0_38] : memref<8x72xbf16, #tpu.memory_space<vmem>>, vector<8x72xbf16>
    %cst_39 = arith.constant dense<0.000000e+00> : vector<8x512xf32>
    %94 = tpu.matmul %93, %92, %cst_39 {dimension_numbers = #tpu.dot_dimension_numbers<[1], [0], [0], [1], [0, 0, 1, 1], [], []>} : vector<8x72xbf16>, vector<72x512xbf16>, vector<8x512xf32> -> vector<8x512xf32>
    %c0_40 = arith.constant 0 : index
    %c0_41 = arith.constant 0 : index
    %95 = vector.load %arg6[%c0_40, %c0_41] : memref<8x1xf32, #tpu.memory_space<vmem>>, vector<8x1xf32>
    %96 = vector.broadcast %95 : vector<8x1xf32> to vector<8x512xf32>
    %97 = arith.addf %94, %96 : vector<8x512xf32>
    %cst_42 = arith.constant 0.000000e+00 : f32
    %98 = vector.broadcast %cst_42 : f32 to vector<8x512xf32>
    %99 = arith.subf %98, %97 : vector<8x512xf32>
    %100 = math.exp %99 : vector<8x512xf32>
    %cst_43 = arith.constant 1.000000e+00 : f32
    %101 = vector.broadcast %cst_43 : f32 to vector<8x512xf32>
    %102 = arith.addf %101, %100 : vector<8x512xf32>
    %103 = tpu.reciprocal %102 {approx = true} : vector<8x512xf32> -> vector<8x512xf32>
    %104 = arith.mulf %97, %103 : vector<8x512xf32>
    %c17_i32_44 = arith.constant 17 : i32
    %105 = tpu.dynamic_rotate %104 by %c17_i32_44 dim 1 : vector<8x512xf32>, i32 -> vector<8x512xf32>
    %c0_45 = arith.constant 0 : index
    %c0_46 = arith.constant 0 : index
    %c0_47 = arith.constant 0 : index
    %106 = vector.load %arg4[%c0_45, %c0_46, %c0_47] : memref<9x8x512xf32, #tpu.memory_space<vmem>>, vector<1x8x512xf32>
    %107 = vector.shape_cast %106 : vector<1x8x512xf32> to vector<8x512xf32>
    %108 = arith.mulf %105, %107 : vector<8x512xf32>
    %109 = arith.truncf %108 : vector<8x512xf32> to vector<8x512xbf16>
    %c16_i32_48 = arith.constant 16 : i32
    %110 = tpu.dynamic_rotate %104 by %c16_i32_48 dim 1 : vector<8x512xf32>, i32 -> vector<8x512xf32>
    %c1_49 = arith.constant 1 : index
    %c0_50 = arith.constant 0 : index
    %c0_51 = arith.constant 0 : index
    %111 = vector.load %arg4[%c1_49, %c0_50, %c0_51] : memref<9x8x512xf32, #tpu.memory_space<vmem>>, vector<1x8x512xf32>
    %112 = vector.shape_cast %111 : vector<1x8x512xf32> to vector<8x512xf32>
    %113 = arith.mulf %110, %112 : vector<8x512xf32>
    %114 = arith.truncf %113 : vector<8x512xf32> to vector<8x512xbf16>
    %c15_i32_52 = arith.constant 15 : i32
    %115 = tpu.dynamic_rotate %104 by %c15_i32_52 dim 1 : vector<8x512xf32>, i32 -> vector<8x512xf32>
    %c2_53 = arith.constant 2 : index
    %c0_54 = arith.constant 0 : index
    %c0_55 = arith.constant 0 : index
    %116 = vector.load %arg4[%c2_53, %c0_54, %c0_55] : memref<9x8x512xf32, #tpu.memory_space<vmem>>, vector<1x8x512xf32>
    %117 = vector.shape_cast %116 : vector<1x8x512xf32> to vector<8x512xf32>
    %118 = arith.mulf %115, %117 : vector<8x512xf32>
    %119 = arith.truncf %118 : vector<8x512xf32> to vector<8x512xbf16>
    %c1_i32_56 = arith.constant 1 : i32
    %120 = tpu.dynamic_rotate %104 by %c1_i32_56 dim 1 : vector<8x512xf32>, i32 -> vector<8x512xf32>
    %c3_57 = arith.constant 3 : index
    %c0_58 = arith.constant 0 : index
    %c0_59 = arith.constant 0 : index
    %121 = vector.load %arg4[%c3_57, %c0_58, %c0_59] : memref<9x8x512xf32, #tpu.memory_space<vmem>>, vector<1x8x512xf32>
    %122 = vector.shape_cast %121 : vector<1x8x512xf32> to vector<8x512xf32>
    %123 = arith.mulf %120, %122 : vector<8x512xf32>
    %124 = arith.truncf %123 : vector<8x512xf32> to vector<8x512xbf16>
    %125 = arith.truncf %104 : vector<8x512xf32> to vector<8x512xbf16>
    %c511_i32_60 = arith.constant 511 : i32
    %126 = tpu.dynamic_rotate %104 by %c511_i32_60 dim 1 : vector<8x512xf32>, i32 -> vector<8x512xf32>
    %c5_61 = arith.constant 5 : index
    %c0_62 = arith.constant 0 : index
    %c0_63 = arith.constant 0 : index
    %127 = vector.load %arg4[%c5_61, %c0_62, %c0_63] : memref<9x8x512xf32, #tpu.memory_space<vmem>>, vector<1x8x512xf32>
    %128 = vector.shape_cast %127 : vector<1x8x512xf32> to vector<8x512xf32>
    %129 = arith.mulf %126, %128 : vector<8x512xf32>
    %130 = arith.truncf %129 : vector<8x512xf32> to vector<8x512xbf16>
    %c497_i32_64 = arith.constant 497 : i32
    %131 = tpu.dynamic_rotate %104 by %c497_i32_64 dim 1 : vector<8x512xf32>, i32 -> vector<8x512xf32>
    %c6_65 = arith.constant 6 : index
    %c0_66 = arith.constant 0 : index
    %c0_67 = arith.constant 0 : index
    %132 = vector.load %arg4[%c6_65, %c0_66, %c0_67] : memref<9x8x512xf32, #tpu.memory_space<vmem>>, vector<1x8x512xf32>
    %133 = vector.shape_cast %132 : vector<1x8x512xf32> to vector<8x512xf32>
    %134 = arith.mulf %131, %133 : vector<8x512xf32>
    %135 = arith.truncf %134 : vector<8x512xf32> to vector<8x512xbf16>
    %c496_i32_68 = arith.constant 496 : i32
    %136 = tpu.dynamic_rotate %104 by %c496_i32_68 dim 1 : vector<8x512xf32>, i32 -> vector<8x512xf32>
    %c7_69 = arith.constant 7 : index
    %c0_70 = arith.constant 0 : index
    %c0_71 = arith.constant 0 : index
    %137 = vector.load %arg4[%c7_69, %c0_70, %c0_71] : memref<9x8x512xf32, #tpu.memory_space<vmem>>, vector<1x8x512xf32>
    %138 = vector.shape_cast %137 : vector<1x8x512xf32> to vector<8x512xf32>
    %139 = arith.mulf %136, %138 : vector<8x512xf32>
    %140 = arith.truncf %139 : vector<8x512xf32> to vector<8x512xbf16>
    %c495_i32_72 = arith.constant 495 : i32
    %141 = tpu.dynamic_rotate %104 by %c495_i32_72 dim 1 : vector<8x512xf32>, i32 -> vector<8x512xf32>
    %c8_73 = arith.constant 8 : index
    %c0_74 = arith.constant 0 : index
    %c0_75 = arith.constant 0 : index
    %142 = vector.load %arg4[%c8_73, %c0_74, %c0_75] : memref<9x8x512xf32, #tpu.memory_space<vmem>>, vector<1x8x512xf32>
    %143 = vector.shape_cast %142 : vector<1x8x512xf32> to vector<8x512xf32>
    %144 = arith.mulf %141, %143 : vector<8x512xf32>
    %145 = arith.truncf %144 : vector<8x512xf32> to vector<8x512xbf16>
    %146 = tpu.concatenate %109, %114, %119, %124, %125, %130, %135, %140, %145 in 0 : vector<8x512xbf16>, vector<8x512xbf16>, vector<8x512xbf16>, vector<8x512xbf16>, vector<8x512xbf16>, vector<8x512xbf16>, vector<8x512xbf16>, vector<8x512xbf16>, vector<8x512xbf16> -> vector<72x512xbf16>
    %c0_76 = arith.constant 0 : index
    %c0_77 = arith.constant 0 : index
    %147 = vector.load %arg7[%c0_76, %c0_77] : memref<8x72xbf16, #tpu.memory_space<vmem>>, vector<8x72xbf16>
    %cst_78 = arith.constant dense<0.000000e+00> : vector<8x512xf32>
    %148 = tpu.matmul %147, %146, %cst_78 {dimension_numbers = #tpu.dot_dimension_numbers<[1], [0], [0], [1], [0, 0, 1, 1], [], []>} : vector<8x72xbf16>, vector<72x512xbf16>, vector<8x512xf32> -> vector<8x512xf32>
    %c0_79 = arith.constant 0 : index
    %c0_80 = arith.constant 0 : index
    %149 = vector.load %arg8[%c0_79, %c0_80] : memref<8x1xf32, #tpu.memory_space<vmem>>, vector<8x1xf32>
    %150 = vector.broadcast %149 : vector<8x1xf32> to vector<8x512xf32>
    %151 = arith.addf %148, %150 : vector<8x512xf32>
    %cst_81 = arith.constant 0.000000e+00 : f32
    %152 = vector.broadcast %cst_81 : f32 to vector<8x512xf32>
    %153 = arith.subf %152, %151 : vector<8x512xf32>
    %154 = math.exp %153 : vector<8x512xf32>
    %cst_82 = arith.constant 1.000000e+00 : f32
    %155 = vector.broadcast %cst_82 : f32 to vector<8x512xf32>
    %156 = arith.addf %155, %154 : vector<8x512xf32>
    %157 = tpu.reciprocal %156 {approx = true} : vector<8x512xf32> -> vector<8x512xf32>
    %158 = arith.mulf %151, %157 : vector<8x512xf32>
    %159 = vector.extract_strided_slice %158 {offsets = [0, 0], sizes = [8, 256], strides = [1, 1]} : vector<8x512xf32> to vector<8x256xf32>
    %c0_83 = arith.constant 0 : index
    %c0_84 = arith.constant 0 : index
    %c0_85 = arith.constant 0 : index
    %160 = vector.load %arg9[%c0_83, %c0_84, %c0_85] : memref<2x8x256xf32, #tpu.memory_space<vmem>>, vector<1x8x256xf32>
    %161 = vector.shape_cast %160 : vector<1x8x256xf32> to vector<8x256xf32>
    %162 = vector.shape_cast %159 : vector<8x256xf32> to vector<1x8x256xf32>
    tpu.vector_store %arg9[%c0_83, %c0_84, %c0_85], %162 {strides = array<i32>} : memref<2x8x256xf32, #tpu.memory_space<vmem>>, vector<1x8x256xf32>,
    %163 = vector.extract_strided_slice %158 {offsets = [0, 256], sizes = [8, 256], strides = [1, 1]} : vector<8x512xf32> to vector<8x256xf32>
    %c1_86 = arith.constant 1 : index
    %c0_87 = arith.constant 0 : index
    %c0_88 = arith.constant 0 : index
    %164 = vector.load %arg9[%c1_86, %c0_87, %c0_88] : memref<2x8x256xf32, #tpu.memory_space<vmem>>, vector<1x8x256xf32>
    %165 = vector.shape_cast %164 : vector<1x8x256xf32> to vector<8x256xf32>
    %166 = vector.shape_cast %163 : vector<8x256xf32> to vector<1x8x256xf32>
    tpu.vector_store %arg9[%c1_86, %c0_87, %c0_88], %166 {strides = array<i32>} : memref<2x8x256xf32, #tpu.memory_space<vmem>>, vector<1x8x256xf32>,
    return
  }
  func.func @transform_0(%arg0: i32) -> (i32, i32, i32) {
    %c0_i32 = arith.constant 0 : i32
    %c0_i32_0 = arith.constant 0 : i32
    %c0_i32_1 = arith.constant 0 : i32
    return %arg0, %c0_i32, %c0_i32_0 : i32, i32, i32
  }
  func.func @transform_1(%arg0: i32) -> (i32, i32) {
    %c0_i32 = arith.constant 0 : i32
    %c0_i32_0 = arith.constant 0 : i32
    %c0_i32_1 = arith.constant 0 : i32
    return %c0_i32, %c0_i32_0 : i32, i32
  }
  func.func @transform_2(%arg0: i32) -> (i32, i32) {
    %c0_i32 = arith.constant 0 : i32
    %c0_i32_0 = arith.constant 0 : i32
    %c0_i32_1 = arith.constant 0 : i32
    return %c0_i32, %c0_i32_0 : i32, i32
  }
  func.func @transform_3(%arg0: i32) -> (i32, i32, i32) {
    %c0_i32 = arith.constant 0 : i32
    %c0_i32_0 = arith.constant 0 : i32
    %c0_i32_1 = arith.constant 0 : i32
    %c0_i32_2 = arith.constant 0 : i32
    return %c0_i32, %c0_i32_0, %c0_i32_1 : i32, i32, i32
  }
  func.func @transform_4(%arg0: i32) -> (i32, i32) {
    %c0_i32 = arith.constant 0 : i32
    %c0_i32_0 = arith.constant 0 : i32
    %c0_i32_1 = arith.constant 0 : i32
    return %c0_i32, %c0_i32_0 : i32, i32
  }
  func.func @transform_5(%arg0: i32) -> (i32, i32) {
    %c0_i32 = arith.constant 0 : i32
    %c0_i32_0 = arith.constant 0 : i32
    %c0_i32_1 = arith.constant 0 : i32
    return %c0_i32, %c0_i32_0 : i32, i32
  }
  func.func @transform_6(%arg0: i32) -> (i32, i32) {
    %c0_i32 = arith.constant 0 : i32
    %c0_i32_0 = arith.constant 0 : i32
    %c0_i32_1 = arith.constant 0 : i32
    return %c0_i32, %c0_i32_0 : i32, i32
  }
  func.func @transform_7(%arg0: i32) -> (i32, i32) {
    %c0_i32 = arith.constant 0 : i32
    %c0_i32_0 = arith.constant 0 : i32
    %c0_i32_1 = arith.constant 0 : i32
    return %c0_i32, %c0_i32_0 : i32, i32
  }
  func.func @transform_8(%arg0: i32) -> (i32, i32, i32) {
    %c0_i32 = arith.constant 0 : i32
    %c0_i32_0 = arith.constant 0 : i32
    %c0_i32_1 = arith.constant 0 : i32
    return %arg0, %c0_i32, %c0_i32_0 : i32, i32, i32
  }
}

</mosaic_0001>

<llo_original>
// kernel: myblock_forward.1
$region0: #{myblock_forward.1}
  #allocation0 [shape = 'u32[]', space=smem, size = 0x4, offset = 0x4, fixed_abs, tag = 'smem constant byte address 0x4 - core index']
  #allocation1 [shape = 'u32[144,128]{1,0:T(1,128)}', space=vmem, size = 0x12000, scoped, tag = 'internal scratch']
  %s0 = inlined_call_operand.vmem [shape: f32[2,8,256], index: 0, kind: input, shape index: {}]
  %s1 = inlined_call_operand.vmem [shape: f32[8,256], index: 1, kind: input, shape index: {}]
  %s2 = inlined_call_operand.vmem [shape: f32[8,256], index: 2, kind: input, shape index: {}]
  %s3 = inlined_call_operand.vmem [shape: f32[9,8,512], index: 3, kind: input, shape index: {}]
  %s4 = inlined_call_operand.vmem [shape: bf16[8,72], index: 4, kind: input, shape index: {}]
  %s5 = inlined_call_operand.vmem [shape: f32[8,1], index: 5, kind: input, shape index: {}]
  %s6 = inlined_call_operand.vmem [shape: bf16[8,72], index: 6, kind: input, shape index: {}]
  %s7 = inlined_call_operand.vmem [shape: f32[8,1], index: 7, kind: input, shape index: {}]
  %s8 = inlined_call_operand.vmem [shape: f32[2,8,256], index: 8, kind: output, shape index: {}]
  %s9 = sld [smem:[#allocation0]]
  $region42: #{myblock_forward.1} parent=0
    _
  %s11 = ssub.s32 1, %s9
  %s12 = scalar_select 0, %s11, %s9
  // Predicated region
  $region2: #{myblock_forward.1} parent=0 // pred_check
    _
  $region3: #{myblock_forward.1} parent=0 // pred_check_branch
    %14 = sbr.rel (0) target = $region5
  $region4: #{myblock_forward.1} parent=0 // pred_region
    _
  $region5: #{myblock_forward.1} parent=0 // pred_fallthru
    _
  // Predicated region
  $region6: #{myblock_forward.1} parent=0 // pred_check
    _
  $region7: #{myblock_forward.1} parent=0 // pred_check_branch
    %16 = sbr.rel (0) target = $region9
  $region8: #{myblock_forward.1} parent=0 // pred_region
    _
  $region9: #{myblock_forward.1} parent=0 // pred_fallthru
    _
  // Predicated region
  $region10: #{myblock_forward.1} parent=0 // pred_check
    _
  $region11: #{myblock_forward.1} parent=0 // pred_check_branch
    %18 = sbr.rel (0) target = $region13
  $region12: #{myblock_forward.1} parent=0 // pred_region
    _
  $region13: #{myblock_forward.1} parent=0 // pred_fallthru
    _
  // Predicated region
  $region14: #{myblock_forward.1} parent=0 // pred_check
    _
  $region15: #{myblock_forward.1} parent=0 // pred_check_branch
    %20 = sbr.rel (0) target = $region17
  $region16: #{myblock_forward.1} parent=0 // pred_region
    _
  $region17: #{myblock_forward.1} parent=0 // pred_fallthru
    _
  // Predicated region
  $region18: #{myblock_forward.1} parent=0 // pred_check
    _
  $region19: #{myblock_forward.1} parent=0 // pred_check_branch
    %22 = sbr.rel (0) target = $region21
  $region20: #{myblock_forward.1} parent=0 // pred_region
    _
  $region21: #{myblock_forward.1} parent=0 // pred_fallthru
    _
  // Predicated region
  $region22: #{myblock_forward.1} parent=0 // pred_check
    _
  $region23: #{myblock_forward.1} parent=0 // pred_check_branch
    %24 = sbr.rel (0) target = $region25
  $region24: #{myblock_forward.1} parent=0 // pred_region
    _
  $region25: #{myblock_forward.1} parent=0 // pred_fallthru
    _
  // Predicated region
  $region26: #{myblock_forward.1} parent=0 // pred_check
    _
  $region27: #{myblock_forward.1} parent=0 // pred_check_branch
    %26 = sbr.rel (0) target = $region29
  $region28: #{myblock_forward.1} parent=0 // pred_region
    _
  $region29: #{myblock_forward.1} parent=0 // pred_fallthru
    _
  // Predicated region
  $region30: #{myblock_forward.1} parent=0 // pred_check
    _
  $region31: #{myblock_forward.1} parent=0 // pred_check_branch
    %28 = sbr.rel (0) target = $region33
  $region32: #{myblock_forward.1} parent=0 // pred_region
    _
  $region33: #{myblock_forward.1} parent=0 // pred_fallthru
    _
  %v30 = vld [vmem:[%s1] sm:$0xff]
  %v31 = vld [vmem:[%s1 + $0x8] sm:$0xff]
  %v32 = vld [vmem:[%s2] sm:$0xff]
  %v33 = vld [vmem:[%s2 + $0x8] sm:$0xff]
  %v34 = vld [vmem:[%s0] sm:$0xff]
  %v35 = vld [vmem:[%s0 + $0x8] sm:$0xff]
  %v36 = vadd.f32 %v34, %v35
  %37 = vadd.xlane.f32.xlu0 %v36
  %v38 = vpop.xlane.xlu0 %37
  %v39 = vrot.slane %v38, 4
  %v40 = vadd.f32 %v38, %v39
  %v41 = vrot.slane %v40, 2
  %v42 = vadd.f32 %v40, %v41
  %v43 = vrot.slane %v42, 1
  %v44 = vadd.f32 %v42, %v43
  %s45 = vtos %v44
  %v46 = vrcp.pop 1024.0
  %s47 = vtos %v46
  %s48 = smul.f32 %s45, %s47
  %v49 = vstv %s48
  %v50 = vsub.f32 %v34, %v49
  %v51 = vsub.f32 %v35, %v49
  %v52 = vmul.f32 %v50, %v50
  %v53 = vmul.f32 %v51, %v51
  %v54 = vadd.f32 %v52, %v53
  %55 = vadd.xlane.f32.xlu0 %v54
  %v56 = vpop.xlane.xlu0 %55
  %v57 = vrot.slane %v56, 4
  %v58 = vadd.f32 %v56, %v57
  %v59 = vrot.slane %v58, 2
  %v60 = vadd.f32 %v58, %v59
  %v61 = vrot.slane %v60, 1
  %v62 = vadd.f32 %v60, %v61
  %s63 = vtos %v62
  %s64 = smul.f32 %s48, 1024.0
  %s65 = smul.f32 %s64, %s48
  %s66 = ssub.f32 %s63, %s65
  %v67 = vrcp.pop 1024.0
  %s68 = vtos %v67
  %s69 = smul.f32 %s66, %s68
  %s70 = sadd.f32 %s69, 1e-05
  %v71 = vstv %s70
  %v72 = vrsqrt.pop %v71
  %s73 = vtos %v72
  %v74 = vstv %s73
  %v75 = vmul.f32 %v30, %v74
  %v76 = vmul.f32 %v31, %v74
  %v77 = vmul.f32 %v50, %v75
  %v78 = vmul.f32 %v51, %v76
  %v79 = vadd.f32 %v77, %v32
  %v80 = vadd.f32 %v78, %v33
  %s81 = scalar_lea.vmem %s0, 16
  %v82 = vld [vmem:[%s81] sm:$0xff]
  %v83 = vld [vmem:[%s81 + $0x8] sm:$0xff]
  %v84 = vadd.f32 %v82, %v83
  %85 = vadd.xlane.f32.xlu0 %v84
  %v86 = vpop.xlane.xlu0 %85
  %v87 = vrot.slane %v86, 4
  %v88 = vadd.f32 %v86, %v87
  %v89 = vrot.slane %v88, 2
  %v90 = vadd.f32 %v88, %v89
  %v91 = vrot.slane %v90, 1
  %v92 = vadd.f32 %v90, %v91
  %s93 = vtos %v92
  %v94 = vrcp.pop 1024.0
  %s95 = vtos %v94
  %s96 = smul.f32 %s93, %s95
  %v97 = vstv %s96
  %v98 = vsub.f32 %v82, %v97
  %v99 = vsub.f32 %v83, %v97
  %v100 = vmul.f32 %v98, %v98
  %v101 = vmul.f32 %v99, %v99
  %v102 = vadd.f32 %v100, %v101
  %103 = vadd.xlane.f32.xlu0 %v102
  %v104 = vpop.xlane.xlu0 %103
  %v105 = vrot.slane %v104, 4
  %v106 = vadd.f32 %v104, %v105
  %v107 = vrot.slane %v106, 2
  %v108 = vadd.f32 %v106, %v107
  %v109 = vrot.slane %v108, 1
  %v110 = vadd.f32 %v108, %v109
  %s111 = vtos %v110
  %s112 = smul.f32 %s96, 1024.0
  %s113 = smul.f32 %s112, %s96
  %s114 = ssub.f32 %s111, %s113
  %v115 = vrcp.pop 1024.0
  %s116 = vtos %v115
  %s117 = smul.f32 %s114, %s116
  %s118 = sadd.f32 %s117, 1e-05
  %v119 = vstv %s118
  %v120 = vrsqrt.pop %v119
  %s121 = vtos %v120
  %v122 = vstv %s121
  %v123 = vmul.f32 %v30, %v122
  %v124 = vmul.f32 %v31, %v122
  %v125 = vmul.f32 %v98, %v123
  %v126 = vmul.f32 %v99, %v124
  %v127 = vadd.f32 %v125, %v32
  %v128 = vadd.f32 %v126, %v33
  %129 = vrot.lane.b32.xlu0 %v79, 17
  %v130 = vpop.permute.xlu0 %129
  %131 = vrot.lane.b32.xlu0 %v80, 17
  %v132 = vpop.permute.xlu0 %131
  %133 = vrot.lane.b32.xlu0 %v127, 17
  %v134 = vpop.permute.xlu0 %133
  %135 = vrot.lane.b32.xlu0 %v128, 17
  %v136 = vpop.permute.xlu0 %135
  %v137 = vlaneseq
  %v138 = vand.u32 %v137, 127
  %vm139 = vcmp.lt.s32.totalorder %v138, 17
  %v140 = vsel %vm139, %v134, %v136
  %v141 = vsel %vm139, %v132, %v134
  %v142 = vsel %vm139, %v130, %v132
  %v143 = vsel %vm139, %v136, %v130
  %v144 = vld [vmem:[%s3] sm:$0xff]
  %v145 = vld [vmem:[%s3 + $0x8] sm:$0xff]
  %v146 = vld [vmem:[%s3 + $0x10] sm:$0xff]
  %v147 = vld [vmem:[%s3 + $0x18] sm:$0xff]
  %v148 = vmul.f32 %v143, %v144
  %v149 = vmul.f32 %v142, %v145
  %v150 = vmul.f32 %v141, %v146
  %v151 = vmul.f32 %v140, %v147
  %v152 = vpack.c.bf16 %v148, %v148
  %v153 = vpack.c.bf16 %v149, %v149
  %v154 = vpack.c.bf16 %v150, %v150
  %v155 = vpack.c.bf16 %v151, %v151
  %156 = vrot.lane.b32.xlu0 %v79, 16
  %v157 = vpop.permute.xlu0 %156
  %158 = vrot.lane.b32.xlu0 %v80, 16
  %v159 = vpop.permute.xlu0 %158
  %160 = vrot.lane.b32.xlu0 %v127, 16
  %v161 = vpop.permute.xlu0 %160
  %162 = vrot.lane.b32.xlu0 %v128, 16
  %v163 = vpop.permute.xlu0 %162
  %vm164 = vcmp.lt.s32.totalorder %v138, 16
  %v165 = vsel %vm164, %v161, %v163
  %v166 = vsel %vm164, %v159, %v161
  %v167 = vsel %vm164, %v157, %v159
  %v168 = vsel %vm164, %v163, %v157
  %s169 = scalar_lea.vmem %s3, 32
  %v170 = vld [vmem:[%s169] sm:$0xff]
  %v171 = vld [vmem:[%s169 + $0x8] sm:$0xff]
  %v172 = vld [vmem:[%s169 + $0x10] sm:$0xff]
  %v173 = vld [vmem:[%s169 + $0x18] sm:$0xff]
  %v174 = vmul.f32 %v168, %v170
  %v175 = vmul.f32 %v167, %v171
  %v176 = vmul.f32 %v166, %v172
  %v177 = vmul.f32 %v165, %v173
  %v178 = vpack.c.bf16 %v174, %v174
  %v179 = vpack.c.bf16 %v175, %v175
  %v180 = vpack.c.bf16 %v176, %v176
  %v181 = vpack.c.bf16 %v177, %v177
  %182 = vrot.lane.b32.xlu0 %v79, 15
  %v183 = vpop.permute.xlu0 %182
  %184 = vrot.lane.b32.xlu0 %v80, 15
  %v185 = vpop.permute.xlu0 %184
  %186 = vrot.lane.b32.xlu0 %v127, 15
  %v187 = vpop.permute.xlu0 %186
  %188 = vrot.lane.b32.xlu0 %v128, 15
  %v189 = vpop.permute.xlu0 %188
  %vm190 = vcmp.lt.s32.totalorder %v138, 15
  %v191 = vsel %vm190, %v187, %v189
  %v192 = vsel %vm190, %v185, %v187
  %v193 = vsel %vm190, %v183, %v185
  %v194 = vsel %vm190, %v189, %v183
  %s195 = scalar_lea.vmem %s3, 64
  %v196 = vld [vmem:[%s195] sm:$0xff]
  %v197 = vld [vmem:[%s195 + $0x8] sm:$0xff]
  %v198 = vld [vmem:[%s195 + $0x10] sm:$0xff]
  %v199 = vld [vmem:[%s195 + $0x18] sm:$0xff]
  %v200 = vmul.f32 %v194, %v196
  %v201 = vmul.f32 %v193, %v197
  %v202 = vmul.f32 %v192, %v198
  %v203 = vmul.f32 %v191, %v199
  %v204 = vpack.c.bf16 %v200, %v200
  %v205 = vpack.c.bf16 %v201, %v201
  %v206 = vpack.c.bf16 %v202, %v202
  %v207 = vpack.c.bf16 %v203, %v203
  %208 = vrot.lane.b32.xlu0 %v79, 1
  %v209 = vpop.permute.xlu0 %208
  %210 = vrot.lane.b32.xlu0 %v80, 1
  %v211 = vpop.permute.xlu0 %210
  %212 = vrot.lane.b32.xlu0 %v127, 1
  %v213 = vpop.permute.xlu0 %212
  %214 = vrot.lane.b32.xlu0 %v128, 1
  %v215 = vpop.permute.xlu0 %214
  %vm216 = vcmp.lt.s32.totalorder %v138, 1
  %v217 = vsel %vm216, %v213, %v215
  %v218 = vsel %vm216, %v211, %v213
  %v219 = vsel %vm216, %v209, %v211
  %v220 = vsel %vm216, %v215, %v209
  %s221 = scalar_lea.vmem %s3, 96
  %v222 = vld [vmem:[%s221] sm:$0xff]
  %v223 = vld [vmem:[%s221 + $0x8] sm:$0xff]
  %v224 = vld [vmem:[%s221 + $0x10] sm:$0xff]
  %v225 = vld [vmem:[%s221 + $0x18] sm:$0xff]
  %v226 = vmul.f32 %v220, %v222
  %v227 = vmul.f32 %v219, %v223
  %v228 = vmul.f32 %v218, %v224
  %v229 = vmul.f32 %v217, %v225
  %v230 = vpack.c.bf16 %v226, %v226
  %v231 = vpack.c.bf16 %v227, %v227
  %v232 = vpack.c.bf16 %v228, %v228
  %v233 = vpack.c.bf16 %v229, %v229
  %v234 = vpack.c.bf16 %v79, %v79
  %v235 = vpack.c.bf16 %v80, %v80
  %v236 = vpack.c.bf16 %v127, %v127
  %v237 = vpack.c.bf16 %v128, %v128
  %238 = vrot.lane.b32.xlu0 %v79, 127
  %v239 = vpop.permute.xlu0 %238
  %240 = vrot.lane.b32.xlu0 %v80, 127
  %v241 = vpop.permute.xlu0 %240
  %242 = vrot.lane.b32.xlu0 %v127, 127
  %v243 = vpop.permute.xlu0 %242
  %244 = vrot.lane.b32.xlu0 %v128, 127
  %v245 = vpop.permute.xlu0 %244
  %vm246 = vcmp.lt.s32.totalorder %v138, 127
  %v247 = vsel %vm246, %v243, %v245
  %v248 = vsel %vm246, %v241, %v243
  %v249 = vsel %vm246, %v239, %v241
  %v250 = vsel %vm246, %v245, %v239
  %s251 = scalar_lea.vmem %s3, 160
  %v252 = vld [vmem:[%s251] sm:$0xff]
  %v253 = vld [vmem:[%s251 + $0x8] sm:$0xff]
  %v254 = vld [vmem:[%s251 + $0x10] sm:$0xff]
  %v255 = vld [vmem:[%s251 + $0x18] sm:$0xff]
  %v256 = vmul.f32 %v249, %v252
  %v257 = vmul.f32 %v248, %v253
  %v258 = vmul.f32 %v247, %v254
  %v259 = vmul.f32 %v250, %v255
  %v260 = vpack.c.bf16 %v256, %v256
  %v261 = vpack.c.bf16 %v257, %v257
  %v262 = vpack.c.bf16 %v258, %v258
  %v263 = vpack.c.bf16 %v259, %v259
  %264 = vrot.lane.b32.xlu0 %v79, 113
  %v265 = vpop.permute.xlu0 %264
  %266 = vrot.lane.b32.xlu0 %v80, 113
  %v267 = vpop.permute.xlu0 %266
  %268 = vrot.lane.b32.xlu0 %v127, 113
  %v269 = vpop.permute.xlu0 %268
  %270 = vrot.lane.b32.xlu0 %v128, 113
  %v271 = vpop.permute.xlu0 %270
  %vm272 = vcmp.lt.s32.totalorder %v138, 113
  %v273 = vsel %vm272, %v269, %v271
  %v274 = vsel %vm272, %v267, %v269
  %v275 = vsel %vm272, %v265, %v267
  %v276 = vsel %vm272, %v271, %v265
  %s277 = scalar_lea.vmem %s3, 192
  %v278 = vld [vmem:[%s277] sm:$0xff]
  %v279 = vld [vmem:[%s277 + $0x8] sm:$0xff]
  %v280 = vld [vmem:[%s277 + $0x10] sm:$0xff]
  %v281 = vld [vmem:[%s277 + $0x18] sm:$0xff]
  %v282 = vmul.f32 %v275, %v278
  %v283 = vmul.f32 %v274, %v279
  %v284 = vmul.f32 %v273, %v280
  %v285 = vmul.f32 %v276, %v281
  %v286 = vpack.c.bf16 %v282, %v282
  %v287 = vpack.c.bf16 %v283, %v283
  %v288 = vpack.c.bf16 %v284, %v284
  %v289 = vpack.c.bf16 %v285, %v285
  %290 = vrot.lane.b32.xlu0 %v79, 112
  %v291 = vpop.permute.xlu0 %290
  %292 = vrot.lane.b32.xlu0 %v80, 112
  %v293 = vpop.permute.xlu0 %292
  %294 = vrot.lane.b32.xlu0 %v127, 112
  %v295 = vpop.permute.xlu0 %294
  %296 = vrot.lane.b32.xlu0 %v128, 112
  %v297 = vpop.permute.xlu0 %296
  %vm298 = vcmp.lt.s32.totalorder %v138, 112
  %v299 = vsel %vm298, %v295, %v297
  %v300 = vsel %vm298, %v293, %v295
  %v301 = vsel %vm298, %v291, %v293
  %v302 = vsel %vm298, %v297, %v291
  %s303 = scalar_lea.vmem %s3, 224
  %v304 = vld [vmem:[%s303] sm:$0xff]
  %v305 = vld [vmem:[%s303 + $0x8] sm:$0xff]
  %v306 = vld [vmem:[%s303 + $0x10] sm:$0xff]
  %v307 = vld [vmem:[%s303 + $0x18] sm:$0xff]
  %v308 = vmul.f32 %v301, %v304
  %v309 = vmul.f32 %v300, %v305
  %v310 = vmul.f32 %v299, %v306
  %v311 = vmul.f32 %v302, %v307
  %v312 = vpack.c.bf16 %v308, %v308
  %v313 = vpack.c.bf16 %v309, %v309
  %v314 = vpack.c.bf16 %v310, %v310
  %v315 = vpack.c.bf16 %v311, %v311
  %316 = vrot.lane.b32.xlu0 %v79, 111
  %v317 = vpop.permute.xlu0 %316
  %318 = vrot.lane.b32.xlu0 %v80, 111
  %v319 = vpop.permute.xlu0 %318
  %320 = vrot.lane.b32.xlu0 %v127, 111
  %v321 = vpop.permute.xlu0 %320
  %322 = vrot.lane.b32.xlu0 %v128, 111
  %v323 = vpop.permute.xlu0 %322
  %vm324 = vcmp.lt.s32.totalorder %v138, 111
  %v325 = vsel %vm324, %v321, %v323
  %v326 = vsel %vm324, %v319, %v321
  %v327 = vsel %vm324, %v317, %v319
  %v328 = vsel %vm324, %v323, %v317
  %s329 = scalar_lea.vmem %s3, 256
  %v330 = vld [vmem:[%s329] sm:$0xff]
  %v331 = vld [vmem:[%s329 + $0x8] sm:$0xff]
  %v332 = vld [vmem:[%s329 + $0x10] sm:$0xff]
  %v333 = vld [vmem:[%s329 + $0x18] sm:$0xff]
  %v334 = vmul.f32 %v327, %v330
  %v335 = vmul.f32 %v326, %v331
  %v336 = vmul.f32 %v325, %v332
  %v337 = vmul.f32 %v328, %v333
  %v338 = vpack.c.bf16 %v334, %v334
  %v339 = vpack.c.bf16 %v335, %v335
  %v340 = vpack.c.bf16 %v336, %v336
  %v341 = vpack.c.bf16 %v337, %v337
  %v346 = vrot.slane %v178, 4
  %v347 = vrot.slane %v179, 4
  %v348 = vrot.slane %v180, 4
  %v349 = vrot.slane %v181, 4
  %v354 = vrot.slane %v230, 4
  %v355 = vrot.slane %v231, 4
  %v356 = vrot.slane %v232, 4
  %v357 = vrot.slane %v233, 4
  %v362 = vrot.slane %v260, 4
  %v363 = vrot.slane %v261, 4
  %v364 = vrot.slane %v262, 4
  %v365 = vrot.slane %v263, 4
  %v370 = vrot.slane %v312, 4
  %v371 = vrot.slane %v313, 4
  %v372 = vrot.slane %v314, 4
  %v373 = vrot.slane %v315, 4
  %vm374 = vcmask 1043456
  %v377 = vsel %vm374, %v152, %v346
  %v381 = vsel %vm374, %v153, %v347
  %v385 = vsel %vm374, %v154, %v348
  %v389 = vsel %vm374, %v155, %v349
  %v393 = vsel %vm374, %v204, %v354
  %v397 = vsel %vm374, %v205, %v355
  %v401 = vsel %vm374, %v206, %v356
  %v405 = vsel %vm374, %v207, %v357
  %v409 = vsel %vm374, %v234, %v362
  %v413 = vsel %vm374, %v235, %v363
  %v417 = vsel %vm374, %v236, %v364
  %v421 = vsel %vm374, %v237, %v365
  %v425 = vsel %vm374, %v286, %v370
  %v429 = vsel %vm374, %v287, %v371
  %v433 = vsel %vm374, %v288, %v372
  %v437 = vsel %vm374, %v289, %v373
  %v439 = vld [vmem:[%s4] sm:$0xf]
  %v440 = vld [vmem:[%s5] sm:$0xff]
  %442 = vset.pattern.permute.xlu0 0
  %443 = vperm.xlu0 %442, %v440
  %v444 = vpop.permute.xlu0 %443
  %vm446 = vcmask 588800
  %v448 = vsel %vm446, %v439, 0
  %v451 = vsel %vm374, %v338, 0
  %v454 = vsel %vm374, %v339, 0
  %v457 = vsel %vm374, %v340, 0
  %v460 = vsel %vm374, %v341, 0
  %462 = vmatprep.subr.bf16.mxu0 %v381
  %463 = vmatpush1.bf16.msra.mxu0 %v377
  %464 = vmatprep.subr.bf16.mxu0 %v397
  %465 = vmatpush1.bf16.msra.mxu0 %v393
  %466 = vmatprep.subr.bf16.mxu0 %v413
  %467 = vmatpush1.bf16.msra.mxu0 %v409
  %468 = vmatprep.subr.bf16.mxu0 %v429
  %469 = vmatpush1.bf16.msra.mxu0 %v425
  %470 = vmatprep.subr.bf16.mxu0 %v454
  %471 = vmatpush1.bf16.msra.mxu0 %v451
  %472 = vmatprep.subr.bf16.mxu0 0
  %473 = vmatpush1.bf16.msra.mxu0 0
  %474 = vmatprep.subr.bf16.mxu0 0
  %475 = vmatpush1.bf16.msra.mxu0 0
  %476 = vmatprep.subr.bf16.mxu0 0
  %477 = vmatpush1.bf16.msra.mxu0 0
  %478 = vmatprep.subr.bf16.mxu0 0
  %479 = vmatpush1.bf16.msra.mxu0 0
  %480 = vmatprep.subr.bf16.mxu0 0
  %481 = vmatpush1.bf16.msra.mxu0 0
  %482 = vmatprep.subr.bf16.mxu0 0
  %483 = vmatpush1.bf16.msra.mxu0 0
  %484 = vmatprep.subr.bf16.mxu0 0
  %485 = vmatpush1.bf16.msra.mxu0 0
  %486 = vmatprep.subr.bf16.mxu0 0
  %487 = vmatpush1.bf16.msra.mxu0 0
  %488 = vmatprep.subr.bf16.mxu0 0
  %489 = vmatpush1.bf16.msra.mxu0 0
  %490 = vmatprep.subr.bf16.mxu0 0
  %491 = vmatpush1.bf16.msra.mxu0 0
  %492 = vmatprep.subr.bf16.mxu0 0
  %493 = vmatpush1.bf16.msra.mxu0 0
  %494 = vmatprep.mubr.bf16.mxu0 0
  %495 = vmatmul.mubr.bf16.gmra.mrb[0].mxu0 %v448
  %v496 = vpop.f32.mrb[0].mxu0
  %v497 = vadd.f32 %v444, %v496
  %v498 = vpop.f32.mrb[0].mxu0
  %v499 = vadd.f32 %v444, %v498
  %v500 = vpop.f32.mrb[0].mxu0
  %v501 = vpop.f32.mrb[0].mxu0
  %502 = vdwg.mxu0
  %503 = vmatprep.subr.bf16.mxu0 %v389
  %504 = vmatpush1.bf16.msra.mxu0 %v385
  %505 = vmatprep.subr.bf16.mxu0 %v405
  %506 = vmatpush1.bf16.msra.mxu0 %v401
  %507 = vmatprep.subr.bf16.mxu0 %v421
  %508 = vmatpush1.bf16.msra.mxu0 %v417
  %509 = vmatprep.subr.bf16.mxu0 %v437
  %510 = vmatpush1.bf16.msra.mxu0 %v433
  %511 = vmatprep.subr.bf16.mxu0 %v460
  %512 = vmatpush1.bf16.msra.mxu0 %v457
  %513 = vmatprep.subr.bf16.mxu0 0
  %514 = vmatpush1.bf16.msra.mxu0 0
  %515 = vmatprep.subr.bf16.mxu0 0
  %516 = vmatpush1.bf16.msra.mxu0 0
  %517 = vmatprep.subr.bf16.mxu0 0
  %518 = vmatpush1.bf16.msra.mxu0 0
  %519 = vmatprep.subr.bf16.mxu0 0
  %520 = vmatpush1.bf16.msra.mxu0 0
  %521 = vmatprep.subr.bf16.mxu0 0
  %522 = vmatpush1.bf16.msra.mxu0 0
  %523 = vmatprep.subr.bf16.mxu0 0
  %524 = vmatpush1.bf16.msra.mxu0 0
  %525 = vmatprep.subr.bf16.mxu0 0
  %526 = vmatpush1.bf16.msra.mxu0 0
  %527 = vmatprep.subr.bf16.mxu0 0
  %528 = vmatpush1.bf16.msra.mxu0 0
  %529 = vmatprep.subr.bf16.mxu0 0
  %530 = vmatpush1.bf16.msra.mxu0 0
  %531 = vmatprep.subr.bf16.mxu0 0
  %532 = vmatpush1.bf16.msra.mxu0 0
  %533 = vmatprep.subr.bf16.mxu0 0
  %534 = vmatpush1.bf16.msra.mxu0 0
  %535 = vmatprep.mubr.bf16.mxu0 0
  %536 = vmatmul.mubr.bf16.gmra.mrb[0].mxu0 %v448
  %v537 = vpop.f32.mrb[0].mxu0
  %v538 = vadd.f32 %v444, %v537
  %v539 = vpop.f32.mrb[0].mxu0
  %v540 = vadd.f32 %v444, %v539
  %v541 = vpop.f32.mrb[0].mxu0
  %v542 = vpop.f32.mrb[0].mxu0
  %543 = vdwg.mxu0
  %v544 = vsub.f32 0.0, %v497
  %v545 = vsub.f32 0.0, %v499
  %v546 = vsub.f32 0.0, %v538
  %v547 = vsub.f32 0.0, %v540
  %v548 = vmul.f32 %v544, 1.442695
  %v549 = vpow.pop %v548
  %v550 = vmul.f32 %v545, 1.442695
  %v551 = vpow.pop %v550
  %v552 = vmul.f32 %v546, 1.442695
  %v553 = vpow.pop %v552
  %v554 = vmul.f32 %v547, 1.442695
  %v555 = vpow.pop %v554
  %v556 = vadd.f32 %v549, 1.0
  %v557 = vadd.f32 %v551, 1.0
  %v558 = vadd.f32 %v553, 1.0
  %v559 = vadd.f32 %v555, 1.0
  %v560 = vrcp.pop %v556
  %v561 = vrcp.pop %v557
  %v562 = vrcp.pop %v558
  %v563 = vrcp.pop %v559
  %v564 = vmul.f32 %v497, %v560
  %v565 = vmul.f32 %v499, %v561
  %v566 = vmul.f32 %v538, %v562
  %v567 = vmul.f32 %v540, %v563
  %568 = vrot.lane.b32.xlu0 %v564, 17
  %v569 = vpop.permute.xlu0 %568
  %570 = vrot.lane.b32.xlu0 %v565, 17
  %v571 = vpop.permute.xlu0 %570
  %572 = vrot.lane.b32.xlu0 %v566, 17
  %v573 = vpop.permute.xlu0 %572
  %574 = vrot.lane.b32.xlu0 %v567, 17
  %v575 = vpop.permute.xlu0 %574
  %v576 = vsel %vm139, %v573, %v575
  %v577 = vsel %vm139, %v571, %v573
  %v578 = vsel %vm139, %v569, %v571
  %v579 = vsel %vm139, %v575, %v569
  %v580 = vmul.f32 %v579, %v144
  %v581 = vmul.f32 %v578, %v145
  %v582 = vmul.f32 %v577, %v146
  %v583 = vmul.f32 %v576, %v147
  %v584 = vpack.c.bf16 %v580, %v580
  %v585 = vpack.c.bf16 %v581, %v581
  %v586 = vpack.c.bf16 %v582, %v582
  %v587 = vpack.c.bf16 %v583, %v583
  %588 = vrot.lane.b32.xlu0 %v564, 16
  %v589 = vpop.permute.xlu0 %588
  %590 = vrot.lane.b32.xlu0 %v565, 16
  %v591 = vpop.permute.xlu0 %590
  %592 = vrot.lane.b32.xlu0 %v566, 16
  %v593 = vpop.permute.xlu0 %592
  %594 = vrot.lane.b32.xlu0 %v567, 16
  %v595 = vpop.permute.xlu0 %594
  %v596 = vsel %vm164, %v593, %v595
  %v597 = vsel %vm164, %v591, %v593
  %v598 = vsel %vm164, %v589, %v591
  %v599 = vsel %vm164, %v595, %v589
  %v600 = vmul.f32 %v599, %v170
  %v601 = vmul.f32 %v598, %v171
  %v602 = vmul.f32 %v597, %v172
  %v603 = vmul.f32 %v596, %v173
  %v604 = vpack.c.bf16 %v600, %v600
  %v605 = vpack.c.bf16 %v601, %v601
  %v606 = vpack.c.bf16 %v602, %v602
  %v607 = vpack.c.bf16 %v603, %v603
  %608 = vrot.lane.b32.xlu0 %v564, 15
  %v609 = vpop.permute.xlu0 %608
  %610 = vrot.lane.b32.xlu0 %v565, 15
  %v611 = vpop.permute.xlu0 %610
  %612 = vrot.lane.b32.xlu0 %v566, 15
  %v613 = vpop.permute.xlu0 %612
  %614 = vrot.lane.b32.xlu0 %v567, 15
  %v615 = vpop.permute.xlu0 %614
  %v616 = vsel %vm190, %v613, %v615
  %v617 = vsel %vm190, %v611, %v613
  %v618 = vsel %vm190, %v609, %v611
  %v619 = vsel %vm190, %v615, %v609
  %v620 = vmul.f32 %v619, %v196
  %v621 = vmul.f32 %v618, %v197
  %v622 = vmul.f32 %v617, %v198
  %v623 = vmul.f32 %v616, %v199
  %v624 = vpack.c.bf16 %v620, %v620
  %v625 = vpack.c.bf16 %v621, %v621
  %v626 = vpack.c.bf16 %v622, %v622
  %v627 = vpack.c.bf16 %v623, %v623
  %628 = vrot.lane.b32.xlu0 %v564, 1
  %v629 = vpop.permute.xlu0 %628
  %630 = vrot.lane.b32.xlu0 %v565, 1
  %v631 = vpop.permute.xlu0 %630
  %632 = vrot.lane.b32.xlu0 %v566, 1
  %v633 = vpop.permute.xlu0 %632
  %634 = vrot.lane.b32.xlu0 %v567, 1
  %v635 = vpop.permute.xlu0 %634
  %v636 = vsel %vm216, %v633, %v635
  %v637 = vsel %vm216, %v631, %v633
  %v638 = vsel %vm216, %v629, %v631
  %v639 = vsel %vm216, %v635, %v629
  %v640 = vmul.f32 %v639, %v222
  %v641 = vmul.f32 %v638, %v223
  %v642 = vmul.f32 %v637, %v224
  %v643 = vmul.f32 %v636, %v225
  %v644 = vpack.c.bf16 %v640, %v640
  %v645 = vpack.c.bf16 %v641, %v641
  %v646 = vpack.c.bf16 %v642, %v642
  %v647 = vpack.c.bf16 %v643, %v643
  %v648 = vpack.c.bf16 %v564, %v564
  %v649 = vpack.c.bf16 %v565, %v565
  %v650 = vpack.c.bf16 %v566, %v566
  %v651 = vpack.c.bf16 %v567, %v567
  %652 = vrot.lane.b32.xlu0 %v564, 127
  %v653 = vpop.permute.xlu0 %652
  %654 = vrot.lane.b32.xlu0 %v565, 127
  %v655 = vpop.permute.xlu0 %654
  %656 = vrot.lane.b32.xlu0 %v566, 127
  %v657 = vpop.permute.xlu0 %656
  %658 = vrot.lane.b32.xlu0 %v567, 127
  %v659 = vpop.permute.xlu0 %658
  %v660 = vsel %vm246, %v657, %v659
  %v661 = vsel %vm246, %v655, %v657
  %v662 = vsel %vm246, %v653, %v655
  %v663 = vsel %vm246, %v659, %v653
  %v664 = vmul.f32 %v662, %v252
  %v665 = vmul.f32 %v661, %v253
  %v666 = vmul.f32 %v660, %v254
  %v667 = vmul.f32 %v663, %v255
  %v668 = vpack.c.bf16 %v664, %v664
  %v669 = vpack.c.bf16 %v665, %v665
  %v670 = vpack.c.bf16 %v666, %v666
  %v671 = vpack.c.bf16 %v667, %v667
  %672 = vrot.lane.b32.xlu0 %v564, 113
  %v673 = vpop.permute.xlu0 %672
  %674 = vrot.lane.b32.xlu0 %v565, 113
  %v675 = vpop.permute.xlu0 %674
  %676 = vrot.lane.b32.xlu0 %v566, 113
  %v677 = vpop.permute.xlu0 %676
  %678 = vrot.lane.b32.xlu0 %v567, 113
  %v679 = vpop.permute.xlu0 %678
  %v680 = vsel %vm272, %v677, %v679
  %v681 = vsel %vm272, %v675, %v677
  %v682 = vsel %vm272, %v673, %v675
  %v683 = vsel %vm272, %v679, %v673
  %v684 = vmul.f32 %v682, %v278
  %v685 = vmul.f32 %v681, %v279
  %v686 = vmul.f32 %v680, %v280
  %v687 = vmul.f32 %v683, %v281
  %v688 = vpack.c.bf16 %v684, %v684
  %v689 = vpack.c.bf16 %v685, %v685
  %v690 = vpack.c.bf16 %v686, %v686
  %v691 = vpack.c.bf16 %v687, %v687
  %692 = vrot.lane.b32.xlu0 %v564, 112
  %v693 = vpop.permute.xlu0 %692
  %694 = vrot.lane.b32.xlu0 %v565, 112
  %v695 = vpop.permute.xlu0 %694
  %696 = vrot.lane.b32.xlu0 %v566, 112
  %v697 = vpop.permute.xlu0 %696
  %698 = vrot.lane.b32.xlu0 %v567, 112
  %v699 = vpop.permute.xlu0 %698
  %v700 = vsel %vm298, %v697, %v699
  %v701 = vsel %vm298, %v695, %v697
  %v702 = vsel %vm298, %v693, %v695
  %v703 = vsel %vm298, %v699, %v693
  %v704 = vmul.f32 %v702, %v304
  %v705 = vmul.f32 %v701, %v305
  %v706 = vmul.f32 %v700, %v306
  %v707 = vmul.f32 %v703, %v307
  %v708 = vpack.c.bf16 %v704, %v704
  %v709 = vpack.c.bf16 %v705, %v705
  %v710 = vpack.c.bf16 %v706, %v706
  %v711 = vpack.c.bf16 %v707, %v707
  %712 = vrot.lane.b32.xlu0 %v564, 111
  %v713 = vpop.permute.xlu0 %712
  %714 = vrot.lane.b32.xlu0 %v565, 111
  %v715 = vpop.permute.xlu0 %714
  %716 = vrot.lane.b32.xlu0 %v566, 111
  %v717 = vpop.permute.xlu0 %716
  %718 = vrot.lane.b32.xlu0 %v567, 111
  %v719 = vpop.permute.xlu0 %718
  %v720 = vsel %vm324, %v717, %v719
  %v721 = vsel %vm324, %v715, %v717
  %v722 = vsel %vm324, %v713, %v715
  %v723 = vsel %vm324, %v719, %v713
  %v724 = vmul.f32 %v722, %v330
  %v725 = vmul.f32 %v721, %v331
  %v726 = vmul.f32 %v720, %v332
  %v727 = vmul.f32 %v723, %v333
  %v728 = vpack.c.bf16 %v724, %v724
  %v729 = vpack.c.bf16 %v725, %v725
  %v730 = vpack.c.bf16 %v726, %v726
  %v731 = vpack.c.bf16 %v727, %v727
  %v736 = vrot.slane %v604, 4
  %v737 = vrot.slane %v605, 4
  %v738 = vrot.slane %v606, 4
  %v739 = vrot.slane %v607, 4
  %v744 = vrot.slane %v644, 4
  %v745 = vrot.slane %v645, 4
  %v746 = vrot.slane %v646, 4
  %v747 = vrot.slane %v647, 4
  %v752 = vrot.slane %v668, 4
  %v753 = vrot.slane %v669, 4
  %v754 = vrot.slane %v670, 4
  %v755 = vrot.slane %v671, 4
  %v760 = vrot.slane %v708, 4
  %v761 = vrot.slane %v709, 4
  %v762 = vrot.slane %v710, 4
  %v763 = vrot.slane %v711, 4
  %v766 = vsel %vm374, %v584, %v736
  %v770 = vsel %vm374, %v585, %v737
  %v774 = vsel %vm374, %v586, %v738
  %v778 = vsel %vm374, %v587, %v739
  %v782 = vsel %vm374, %v624, %v744
  %v786 = vsel %vm374, %v625, %v745
  %v790 = vsel %vm374, %v626, %v746
  %v794 = vsel %vm374, %v627, %v747
  %v798 = vsel %vm374, %v648, %v752
  %v802 = vsel %vm374, %v649, %v753
  %v806 = vsel %vm374, %v650, %v754
  %v810 = vsel %vm374, %v651, %v755
  %v814 = vsel %vm374, %v688, %v760
  %v818 = vsel %vm374, %v689, %v761
  %v822 = vsel %vm374, %v690, %v762
  %v826 = vsel %vm374, %v691, %v763
  %v828 = vld [vmem:[%s6] sm:$0xf]
  %v829 = vld [vmem:[%s7] sm:$0xff]
  %831 = vset.pattern.permute.xlu0 0
  %832 = vperm.xlu0 %831, %v829
  %v833 = vpop.permute.xlu0 %832
  %v836 = vsel %vm446, %v828, 0
  %v839 = vsel %vm374, %v728, 0
  %v842 = vsel %vm374, %v729, 0
  %v845 = vsel %vm374, %v730, 0
  %v848 = vsel %vm374, %v731, 0
  %850 = vmatprep.subr.bf16.mxu0 %v770
  %851 = vmatpush1.bf16.msra.mxu0 %v766
  %852 = vmatprep.subr.bf16.mxu0 %v786
  %853 = vmatpush1.bf16.msra.mxu0 %v782
  %854 = vmatprep.subr.bf16.mxu0 %v802
  %855 = vmatpush1.bf16.msra.mxu0 %v798
  %856 = vmatprep.subr.bf16.mxu0 %v818
  %857 = vmatpush1.bf16.msra.mxu0 %v814
  %858 = vmatprep.subr.bf16.mxu0 %v842
  %859 = vmatpush1.bf16.msra.mxu0 %v839
  %860 = vmatprep.subr.bf16.mxu0 0
  %861 = vmatpush1.bf16.msra.mxu0 0
  %862 = vmatprep.subr.bf16.mxu0 0
  %863 = vmatpush1.bf16.msra.mxu0 0
  %864 = vmatprep.subr.bf16.mxu0 0
  %865 = vmatpush1.bf16.msra.mxu0 0
  %866 = vmatprep.subr.bf16.mxu0 0
  %867 = vmatpush1.bf16.msra.mxu0 0
  %868 = vmatprep.subr.bf16.mxu0 0
  %869 = vmatpush1.bf16.msra.mxu0 0
  %870 = vmatprep.subr.bf16.mxu0 0
  %871 = vmatpush1.bf16.msra.mxu0 0
  %872 = vmatprep.subr.bf16.mxu0 0
  %873 = vmatpush1.bf16.msra.mxu0 0
  %874 = vmatprep.subr.bf16.mxu0 0
  %875 = vmatpush1.bf16.msra.mxu0 0
  %876 = vmatprep.subr.bf16.mxu0 0
  %877 = vmatpush1.bf16.msra.mxu0 0
  %878 = vmatprep.subr.bf16.mxu0 0
  %879 = vmatpush1.bf16.msra.mxu0 0
  %880 = vmatprep.subr.bf16.mxu0 0
  %881 = vmatpush1.bf16.msra.mxu0 0
  %882 = vmatprep.mubr.bf16.mxu0 0
  %883 = vmatmul.mubr.bf16.gmra.mrb[0].mxu0 %v836
  %v884 = vpop.f32.mrb[0].mxu0
  %v885 = vadd.f32 %v833, %v884
  %v886 = vpop.f32.mrb[0].mxu0
  %v887 = vadd.f32 %v833, %v886
  %v888 = vpop.f32.mrb[0].mxu0
  %v889 = vpop.f32.mrb[0].mxu0
  %890 = vdwg.mxu0
  %891 = vmatprep.subr.bf16.mxu0 %v778
  %892 = vmatpush1.bf16.msra.mxu0 %v774
  %893 = vmatprep.subr.bf16.mxu0 %v794
  %894 = vmatpush1.bf16.msra.mxu0 %v790
  %895 = vmatprep.subr.bf16.mxu0 %v810
  %896 = vmatpush1.bf16.msra.mxu0 %v806
  %897 = vmatprep.subr.bf16.mxu0 %v826
  %898 = vmatpush1.bf16.msra.mxu0 %v822
  %899 = vmatprep.subr.bf16.mxu0 %v848
  %900 = vmatpush1.bf16.msra.mxu0 %v845
  %901 = vmatprep.subr.bf16.mxu0 0
  %902 = vmatpush1.bf16.msra.mxu0 0
  %903 = vmatprep.subr.bf16.mxu0 0
  %904 = vmatpush1.bf16.msra.mxu0 0
  %905 = vmatprep.subr.bf16.mxu0 0
  %906 = vmatpush1.bf16.msra.mxu0 0
  %907 = vmatprep.subr.bf16.mxu0 0
  %908 = vmatpush1.bf16.msra.mxu0 0
  %909 = vmatprep.subr.bf16.mxu0 0
  %910 = vmatpush1.bf16.msra.mxu0 0
  %911 = vmatprep.subr.bf16.mxu0 0
  %912 = vmatpush1.bf16.msra.mxu0 0
  %913 = vmatprep.subr.bf16.mxu0 0
  %914 = vmatpush1.bf16.msra.mxu0 0
  %915 = vmatprep.subr.bf16.mxu0 0
  %916 = vmatpush1.bf16.msra.mxu0 0
  %917 = vmatprep.subr.bf16.mxu0 0
  %918 = vmatpush1.bf16.msra.mxu0 0
  %919 = vmatprep.subr.bf16.mxu0 0
  %920 = vmatpush1.bf16.msra.mxu0 0
  %921 = vmatprep.subr.bf16.mxu0 0
  %922 = vmatpush1.bf16.msra.mxu0 0
  %923 = vmatprep.mubr.bf16.mxu0 0
  %924 = vmatmul.mubr.bf16.gmra.mrb[0].mxu0 %v836
  %v925 = vpop.f32.mrb[0].mxu0
  %v926 = vadd.f32 %v833, %v925
  %v927 = vpop.f32.mrb[0].mxu0
  %v928 = vadd.f32 %v833, %v927
  %v929 = vpop.f32.mrb[0].mxu0
  %v930 = vpop.f32.mrb[0].mxu0
  %931 = vdwg.mxu0
  %v932 = vsub.f32 0.0, %v885
  %v933 = vsub.f32 0.0, %v887
  %v934 = vsub.f32 0.0, %v926
  %v935 = vsub.f32 0.0, %v928
  %v936 = vmul.f32 %v932, 1.442695
  %v937 = vpow.pop %v936
  %v938 = vmul.f32 %v933, 1.442695
  %v939 = vpow.pop %v938
  %v940 = vmul.f32 %v934, 1.442695
  %v941 = vpow.pop %v940
  %v942 = vmul.f32 %v935, 1.442695
  %v943 = vpow.pop %v942
  %v944 = vadd.f32 %v937, 1.0
  %v945 = vadd.f32 %v939, 1.0
  %v946 = vadd.f32 %v941, 1.0
  %v947 = vadd.f32 %v943, 1.0
  %v948 = vrcp.pop %v944
  %v949 = vrcp.pop %v945
  %v950 = vrcp.pop %v946
  %v951 = vrcp.pop %v947
  %v952 = vmul.f32 %v885, %v948
  %v953 = vmul.f32 %v887, %v949
  %v954 = vmul.f32 %v926, %v950
  %v955 = vmul.f32 %v928, %v951
  %956 = vst [vmem:[%s8] sm:$0xff] %v952
  %957 = vst [vmem:[%s8 + $0x8] sm:$0xff] %v953
  %s958 = scalar_lea.vmem %s8, 16
  %959 = vst [vmem:[%s958] sm:$0xff] %v954
  %960 = vst [vmem:[%s958 + $0x8] sm:$0xff] %v955
  // Predicated region
  $region34: #{myblock_forward.1} parent=0 // pred_check
    _
  $region35: #{myblock_forward.1} parent=0 // pred_check_branch
    %962 = sbr.rel (0) target = $region37
  $region36: #{myblock_forward.1} parent=0 // pred_region
    _
  $region37: #{myblock_forward.1} parent=0 // pred_fallthru
    _
  // Predicated region
  $region38: #{myblock_forward.1} parent=0 // pred_check
    _
  $region39: #{myblock_forward.1} parent=0 // pred_check_branch
    %964 = sbr.rel (0) target = $region41
  $region40: #{myblock_forward.1} parent=0 // pred_region
    _
  $region41: #{myblock_forward.1} parent=0 // pred_fallthru
    _

</llo_original>
